<compile_context>
chip_gen: v7x
topology: tpu7x:2x2x1
jax: 0.10.0
libtpu: 0.0.40
codegen_flags: <defaults>
</compile_context>

<pallas_src>
import jax
import jax.numpy as jnp
from jax.experimental import pallas as pl
from jax.experimental.pallas import tpu as pltpu

INIT_DIM = 6      # use_coords_augment=True -> 3 coords + (r, theta, phi)
BN_EPS = 1e-5


# ----------------------------------------------------------------------------
# Deterministic parameter construction (shapes follow PointSamplingNet.__init__)
# NOTE: BatchNorm is folded in EVAL mode (running statistics); this matches the
# PyTorch module in inference mode only.
# ----------------------------------------------------------------------------
def init_params(key, mlps):
    """Flat list of arrays, in the exact order the kernel consumes them.

    Inner Conv1d+BN+ReLU layer:            [W' (C_out, C_in), shift (C_out, 1)]
      where W' = W * bn_scale[:, None]  (BN scale folded into the weight).
    First layer of stages > 0 (concat replaced by split weights):
      [W_feat' (C_out, prev_C), W_aug' (C_out, 6), shift (C_out, 1)]
    Final biased Conv1d -> 1 channel:      [W (1, C_in), bias (1, 1)]
    """
    flat = []
    in_ch = INIT_DIM
    n_stages = len(mlps)
    for si, mlp in enumerate(mlps):
        ic = in_ch
        for li, oc in enumerate(mlp):
            key, kw, kg, kb, km, kv = jax.random.split(key, 6)
            w = 0.1 * jax.random.normal(kw, (oc, ic), jnp.float32)       # Conv1d weight (no bias)
            gamma = 1.0 + 0.1 * jax.random.normal(kg, (oc,), jnp.float32)
            beta = 0.1 * jax.random.normal(kb, (oc,), jnp.float32)
            rmean = 0.1 * jax.random.normal(km, (oc,), jnp.float32)
            rvar = 1.0 + 0.1 * jax.random.uniform(kv, (oc,), jnp.float32)
            scale = gamma / jnp.sqrt(rvar + BN_EPS)                      # eval-mode BN fold
            shift = beta - rmean * scale
            w_folded = w * scale[:, None]                                # fold BN scale into W
            if si > 0 and li == 0:
                prev_c = ic - INIT_DIM
                # torch concat order: [feats + global_max ; xyz_aug]
                flat += [w_folded[:, :prev_c], w_folded[:, prev_c:], shift[:, None]]
            else:
                flat += [w_folded, shift[:, None]]
            ic = oc
        if si == n_stages - 1:
            key, kw, kb = jax.random.split(key, 3)
            w = 0.1 * jax.random.normal(kw, (1, ic), jnp.float32)        # final Conv1d -> 1, bias=True
            b = 0.1 * jax.random.normal(kb, (1,), jnp.float32)
            flat += [w, b[:, None]]
        in_ch = mlp[-1] + INIT_DIM
    return flat


# ----------------------------------------------------------------------------
# Pallas kernel: channels-first MLP stack (Bb batch elements per grid step)
# ----------------------------------------------------------------------------
def make_kernel(mlps, bb):
    n_stages = len(mlps)

    def kernel(xa_ref, *refs):
        out_ref = refs[-1]
        prefs = refs[:-1]
        for b in range(bb):                              # small unrolled batch loop
            xa = xa_ref[b]                               # (6, N) augmented coords, channels-first
            feats = xa
            ri = 0
            for si, mlp in enumerate(mlps):
                for li, _ in enumerate(mlp):
                    if si > 0 and li == 0:
                        # previous stage output -> global max, then split-dot
                        # replaces concat([feats + g, xa]) @ W^T (width-22 concat removed)
                        w_f = prefs[ri][...]             # (C_out, prev_C), BN-folded
                        w_a = prefs[ri + 1][...]         # (C_out, 6), BN-folded
                        sh = prefs[ri + 2][...]          # (C_out, 1)
                        ri += 3
                        g = jnp.max(feats, axis=-1, keepdims=True)        # global max over points
                        feats = (jnp.dot(w_f, feats + g, preferred_element_type=jnp.float32)
                                 + jnp.dot(w_a, xa, preferred_element_type=jnp.float32))
                        feats = jnp.maximum(feats + sh, 0.0)              # BN shift + ReLU
                    else:
                        w = prefs[ri][...]               # (C_out, C_in), BN-folded
                        sh = prefs[ri + 1][...]          # (C_out, 1)
                        ri += 2
                        feats = jnp.dot(w, feats, preferred_element_type=jnp.float32)
                        feats = jnp.maximum(feats + sh, 0.0)              # BN shift + ReLU
            # final biased Conv1d -> 1 channel (last stage only)
            w = prefs[ri][...]                           # (1, C_in)
            bia = prefs[ri + 1][...]                     # (1, 1)
            ri += 2
            assert ri == len(prefs), (ri, len(prefs))
            out_ref[b] = jnp.dot(w, feats, preferred_element_type=jnp.float32) + bia   # (1, N)

    return kernel


def psnet_logits(xa_t, params, mlps, bb=None):
    """xa_t: (B, 6, N) channels-first -> logits (B, 1, N) (lane-dense output)."""
    B, C0, N = xa_t.shape
    if bb is None:
        bb = min(B, 8)                                   # amortize per-grid-step overhead
        while B % bb:
            bb -= 1
    kernel = make_kernel(mlps, bb)

    in_specs = [pl.BlockSpec((bb, C0, N), lambda i: (i, 0, 0))]
    for p in params:
        in_specs.append(pl.BlockSpec(p.shape, lambda i, nd=p.ndim: (0,) * nd))

    return pl.pallas_call(
        kernel,
        out_shape=jax.ShapeDtypeStruct((B, 1, N), jnp.float32),
        grid_spec=pltpu.PrefetchScalarGridSpec(
            num_scalar_prefetch=0,
            grid=(B // bb,),
            in_specs=in_specs,
            out_specs=pl.BlockSpec((bb, 1, N), lambda i: (i, 0, 0)),
        ),
        compiler_params=pltpu.CompilerParams(dimension_semantics=("parallel",)),
    )(xa_t, *params)


# ----------------------------------------------------------------------------
# Full forward (glue around the kernel)
# ----------------------------------------------------------------------------
def point_sampling_net_forward(xyz, params, mlps, npoint, key):
    # coords_augment, built directly channels-first (B, 6, N).
    # TODO(synk): arccos/atan2 kept in plain JAX (Mosaic lowering of these
    # transcendentals is not guaranteed); ratio clamped / r guarded vs NaN.
    x, y, z = xyz[..., 0], xyz[..., 1], xyz[..., 2]
    r = jnp.sqrt(x * x + y * y + z * z)
    safe_r = jnp.maximum(r, 1e-12)
    th = jnp.arccos(jnp.clip(z / safe_r, -1.0, 1.0))
    fi = jnp.arctan2(y, x)
    xa_t = jnp.stack([x, y, z, r, th, fi], axis=1)               # (B, 6, N)

    logits = psnet_logits(xa_t, params, mlps)                    # (B, 1, N) == torch point_feats

    # gumbel_sigmoid — numerically stable form: t1/(t1+t2) == sigmoid((x+g1)-g2)
    eps = 1e-20
    k1, k2 = jax.random.split(key)
    u1 = jax.random.uniform(k1, logits.shape)
    u2 = jax.random.uniform(k2, logits.shape)
    g1 = -jnp.log(-jnp.log(u1 + eps) + eps)
    g2 = -jnp.log(-jnp.log(u2 + eps) + eps)
    sample_probs = jax.nn.sigmoid(logits + g1 - g2)              # (B, 1, N)

    # top-k -> hard mask -> masked select of xyz (selected rows keep original order)
    # TODO(synk): top-k / scatter / masked-select kept in plain JAX (no clean Pallas equivalent)
    _, idx = jax.lax.top_k(sample_probs, npoint)                 # (B, 1, npoint)
    idx_sorted = jnp.sort(idx[:, 0, :], axis=-1)                 # (B, npoint) ascending == mask order
    idx3 = jnp.broadcast_to(idx_sorted[..., None], (*idx_sorted.shape, 3))
    sampled_xyz = jnp.take_along_axis(xyz, idx3, axis=1)         # (B, npoint, 3)
    return sampled_xyz, sample_probs


if __name__ == "__main__":
    B, N, NPOINT = 2, 128, 16
    MLPS = [[16, 16], [16]]   # mlps[:-1] feed split-dot(feat + global_max | xyz_aug); mlps[-1] ends in 1-ch conv

    key = jax.random.PRNGKey(0)
    kx, kp, kg = jax.random.split(key, 3)
    xyz = jax.random.normal(kx, (B, N, 3), jnp.float32)
    params = init_params(kp, MLPS)

    sampled_xyz, probs = point_sampling_net_forward(xyz, params, MLPS, NPOINT, kg)
    sampled_xyz = jax.block_until_ready(sampled_xyz)

    assert sampled_xyz.shape == (B, NPOINT, 3), sampled_xyz.shape
    assert probs.shape == (B, 1, N), probs.shape
    assert bool(jnp.all(jnp.isfinite(sampled_xyz)))
    assert bool(jnp.all(jnp.isfinite(probs)))
    print("KERNEL_OK")
</pallas_src>

<mosaic_0001>
module attributes {stable_mosaic.version = 11 : i64} {
  func.func @kernel(%arg0: i32, %arg1: memref<2x6x128xf32, #tpu.memory_space<vmem>>, %arg2: memref<16x6xf32, #tpu.memory_space<vmem>>, %arg3: memref<16x1xf32, #tpu.memory_space<vmem>>, %arg4: memref<16x16xf32, #tpu.memory_space<vmem>>, %arg5: memref<16x1xf32, #tpu.memory_space<vmem>>, %arg6: memref<16x16xf32, #tpu.memory_space<vmem>>, %arg7: memref<16x6xf32, #tpu.memory_space<vmem>>, %arg8: memref<16x1xf32, #tpu.memory_space<vmem>>, %arg9: memref<1x16xf32, #tpu.memory_space<vmem>>, %arg10: memref<1x1xf32, #tpu.memory_space<vmem>>, %arg11: memref<2x1x128xf32, #tpu.memory_space<vmem>>) attributes {dimension_semantics = [#tpu.dimension_semantics<parallel>], iteration_bounds = array<i64: 1>, scalar_prefetch = 0 : i64, scratch_operands = 0 : i64, tpu.core_type = #tpu.core_type<tc>, window_params = [{transform_indices = @transform_0, window_bounds = array<i64: 2, 6, 128>}, {pipeline_mode = #tpu.pipeline_mode<synchronous>, transform_indices = @transform_1, window_bounds = array<i64: 16, 6>}, {pipeline_mode = #tpu.pipeline_mode<synchronous>, transform_indices = @transform_2, window_bounds = array<i64: 16, 1>}, {pipeline_mode = #tpu.pipeline_mode<synchronous>, transform_indices = @transform_3, window_bounds = array<i64: 16, 16>}, {pipeline_mode = #tpu.pipeline_mode<synchronous>, transform_indices = @transform_4, window_bounds = array<i64: 16, 1>}, {pipeline_mode = #tpu.pipeline_mode<synchronous>, transform_indices = @transform_5, window_bounds = array<i64: 16, 16>}, {pipeline_mode = #tpu.pipeline_mode<synchronous>, transform_indices = @transform_6, window_bounds = array<i64: 16, 6>}, {pipeline_mode = #tpu.pipeline_mode<synchronous>, transform_indices = @transform_7, window_bounds = array<i64: 16, 1>}, {pipeline_mode = #tpu.pipeline_mode<synchronous>, transform_indices = @transform_8, window_bounds = array<i64: 1, 16>}, {pipeline_mode = #tpu.pipeline_mode<synchronous>, transform_indices = @transform_9, window_bounds = array<i64: 1, 1>}, {transform_indices = @transform_10, window_bounds = array<i64: 2, 1, 128>}]} {
    %c0 = arith.constant 0 : index
    %c0_0 = arith.constant 0 : index
    %c0_1 = arith.constant 0 : index
    %0 = vector.load %arg1[%c0, %c0_0, %c0_1] : memref<2x6x128xf32, #tpu.memory_space<vmem>>, vector<1x6x128xf32>
    %1 = vector.shape_cast %0 : vector<1x6x128xf32> to vector<6x128xf32>
    %c0_2 = arith.constant 0 : index
    %c0_3 = arith.constant 0 : index
    %2 = vector.load %arg2[%c0_2, %c0_3] : memref<16x6xf32, #tpu.memory_space<vmem>>, vector<16x6xf32>
    %c0_4 = arith.constant 0 : index
    %c0_5 = arith.constant 0 : index
    %3 = vector.load %arg3[%c0_4, %c0_5] : memref<16x1xf32, #tpu.memory_space<vmem>>, vector<16x1xf32>
    %cst = arith.constant dense<0.000000e+00> : vector<16x128xf32>
    %4 = tpu.matmul %2, %1, %cst {dimension_numbers = #tpu.dot_dimension_numbers<[1], [0], [0], [1], [0, 0, 1, 1], [], []>} : vector<16x6xf32>, vector<6x128xf32>, vector<16x128xf32> -> vector<16x128xf32>
    %5 = vector.broadcast %3 : vector<16x1xf32> to vector<16x128xf32>
    %6 = arith.addf %4, %5 : vector<16x128xf32>
    %cst_6 = arith.constant 0.000000e+00 : f32
    %7 = vector.broadcast %cst_6 : f32 to vector<16x128xf32>
    %8 = arith.maximumf %6, %7 : vector<16x128xf32>
    %c0_7 = arith.constant 0 : index
    %c0_8 = arith.constant 0 : index
    %9 = vector.load %arg4[%c0_7, %c0_8] : memref<16x16xf32, #tpu.memory_space<vmem>>, vector<16x16xf32>
    %c0_9 = arith.constant 0 : index
    %c0_10 = arith.constant 0 : index
    %10 = vector.load %arg5[%c0_9, %c0_10] : memref<16x1xf32, #tpu.memory_space<vmem>>, vector<16x1xf32>
    %cst_11 = arith.constant dense<0.000000e+00> : vector<16x128xf32>
    %11 = tpu.matmul %9, %8, %cst_11 {dimension_numbers = #tpu.dot_dimension_numbers<[1], [0], [0], [1], [0, 0, 1, 1], [], []>} : vector<16x16xf32>, vector<16x128xf32>, vector<16x128xf32> -> vector<16x128xf32>
    %12 = vector.broadcast %10 : vector<16x1xf32> to vector<16x128xf32>
    %13 = arith.addf %11, %12 : vector<16x128xf32>
    %cst_12 = arith.constant 0.000000e+00 : f32
    %14 = vector.broadcast %cst_12 : f32 to vector<16x128xf32>
    %15 = arith.maximumf %13, %14 : vector<16x128xf32>
    %c0_13 = arith.constant 0 : index
    %c0_14 = arith.constant 0 : index
    %16 = vector.load %arg6[%c0_13, %c0_14] : memref<16x16xf32, #tpu.memory_space<vmem>>, vector<16x16xf32>
    %c0_15 = arith.constant 0 : index
    %c0_16 = arith.constant 0 : index
    %17 = vector.load %arg7[%c0_15, %c0_16] : memref<16x6xf32, #tpu.memory_space<vmem>>, vector<16x6xf32>
    %c0_17 = arith.constant 0 : index
    %c0_18 = arith.constant 0 : index
    %18 = vector.load %arg8[%c0_17, %c0_18] : memref<16x1xf32, #tpu.memory_space<vmem>>, vector<16x1xf32>
    %cst_19 = arith.constant dense<0xFF800000> : vector<16xf32>
    %19 = vector.multi_reduction <maximumf>, %15, %cst_19 [1] : vector<16x128xf32> to vector<16xf32>
    %20 = vector.shape_cast %19 : vector<16xf32> to vector<16x1xf32>
    %21 = vector.broadcast %20 : vector<16x1xf32> to vector<16x128xf32>
    %22 = arith.addf %15, %21 : vector<16x128xf32>
    %cst_20 = arith.constant dense<0.000000e+00> : vector<16x128xf32>
    %23 = tpu.matmul %16, %22, %cst_20 {dimension_numbers = #tpu.dot_dimension_numbers<[1], [0], [0], [1], [0, 0, 1, 1], [], []>} : vector<16x16xf32>, vector<16x128xf32>, vector<16x128xf32> -> vector<16x128xf32>
    %cst_21 = arith.constant dense<0.000000e+00> : vector<16x128xf32>
    %24 = tpu.matmul %17, %1, %cst_21 {dimension_numbers = #tpu.dot_dimension_numbers<[1], [0], [0], [1], [0, 0, 1, 1], [], []>} : vector<16x6xf32>, vector<6x128xf32>, vector<16x128xf32> -> vector<16x128xf32>
    %25 = arith.addf %23, %24 : vector<16x128xf32>
    %26 = vector.broadcast %18 : vector<16x1xf32> to vector<16x128xf32>
    %27 = arith.addf %25, %26 : vector<16x128xf32>
    %cst_22 = arith.constant 0.000000e+00 : f32
    %28 = vector.broadcast %cst_22 : f32 to vector<16x128xf32>
    %29 = arith.maximumf %27, %28 : vector<16x128xf32>
    %c0_23 = arith.constant 0 : index
    %c0_24 = arith.constant 0 : index
    %30 = vector.load %arg9[%c0_23, %c0_24] : memref<1x16xf32, #tpu.memory_space<vmem>>, vector<1x16xf32>
    %c0_25 = arith.constant 0 : index
    %c0_26 = arith.constant 0 : index
    %31 = vector.load %arg10[%c0_25, %c0_26] : memref<1x1xf32, #tpu.memory_space<vmem>>, vector<1x1xf32>
    %cst_27 = arith.constant dense<0.000000e+00> : vector<1x128xf32>
    %32 = tpu.matmul %30, %29, %cst_27 {dimension_numbers = #tpu.dot_dimension_numbers<[1], [0], [0], [1], [0, 0, 1, 1], [], []>} : vector<1x16xf32>, vector<16x128xf32>, vector<1x128xf32> -> vector<1x128xf32>
    %33 = vector.broadcast %31 : vector<1x1xf32> to vector<1x128xf32>
    %34 = arith.addf %32, %33 : vector<1x128xf32>
    %c0_28 = arith.constant 0 : index
    %c0_29 = arith.constant 0 : index
    %c0_30 = arith.constant 0 : index
    %35 = vector.load %arg11[%c0_28, %c0_29, %c0_30] : memref<2x1x128xf32, #tpu.memory_space<vmem>>, vector<1x1x128xf32>
    %36 = vector.shape_cast %35 : vector<1x1x128xf32> to vector<1x128xf32>
    %37 = vector.shape_cast %34 : vector<1x128xf32> to vector<1x1x128xf32>
    tpu.vector_store %arg11[%c0_28, %c0_29, %c0_30], %37 {strides = array<i32>} : memref<2x1x128xf32, #tpu.memory_space<vmem>>, vector<1x1x128xf32>,
    %c1 = arith.constant 1 : index
    %c0_31 = arith.constant 0 : index
    %c0_32 = arith.constant 0 : index
    %38 = vector.load %arg1[%c1, %c0_31, %c0_32] : memref<2x6x128xf32, #tpu.memory_space<vmem>>, vector<1x6x128xf32>
    %39 = vector.shape_cast %38 : vector<1x6x128xf32> to vector<6x128xf32>
    %c0_33 = arith.constant 0 : index
    %c0_34 = arith.constant 0 : index
    %40 = vector.load %arg2[%c0_33, %c0_34] : memref<16x6xf32, #tpu.memory_space<vmem>>, vector<16x6xf32>
    %c0_35 = arith.constant 0 : index
    %c0_36 = arith.constant 0 : index
    %41 = vector.load %arg3[%c0_35, %c0_36] : memref<16x1xf32, #tpu.memory_space<vmem>>, vector<16x1xf32>
    %cst_37 = arith.constant dense<0.000000e+00> : vector<16x128xf32>
    %42 = tpu.matmul %40, %39, %cst_37 {dimension_numbers = #tpu.dot_dimension_numbers<[1], [0], [0], [1], [0, 0, 1, 1], [], []>} : vector<16x6xf32>, vector<6x128xf32>, vector<16x128xf32> -> vector<16x128xf32>
    %43 = vector.broadcast %41 : vector<16x1xf32> to vector<16x128xf32>
    %44 = arith.addf %42, %43 : vector<16x128xf32>
    %cst_38 = arith.constant 0.000000e+00 : f32
    %45 = vector.broadcast %cst_38 : f32 to vector<16x128xf32>
    %46 = arith.maximumf %44, %45 : vector<16x128xf32>
    %c0_39 = arith.constant 0 : index
    %c0_40 = arith.constant 0 : index
    %47 = vector.load %arg4[%c0_39, %c0_40] : memref<16x16xf32, #tpu.memory_space<vmem>>, vector<16x16xf32>
    %c0_41 = arith.constant 0 : index
    %c0_42 = arith.constant 0 : index
    %48 = vector.load %arg5[%c0_41, %c0_42] : memref<16x1xf32, #tpu.memory_space<vmem>>, vector<16x1xf32>
    %cst_43 = arith.constant dense<0.000000e+00> : vector<16x128xf32>
    %49 = tpu.matmul %47, %46, %cst_43 {dimension_numbers = #tpu.dot_dimension_numbers<[1], [0], [0], [1], [0, 0, 1, 1], [], []>} : vector<16x16xf32>, vector<16x128xf32>, vector<16x128xf32> -> vector<16x128xf32>
    %50 = vector.broadcast %48 : vector<16x1xf32> to vector<16x128xf32>
    %51 = arith.addf %49, %50 : vector<16x128xf32>
    %cst_44 = arith.constant 0.000000e+00 : f32
    %52 = vector.broadcast %cst_44 : f32 to vector<16x128xf32>
    %53 = arith.maximumf %51, %52 : vector<16x128xf32>
    %c0_45 = arith.constant 0 : index
    %c0_46 = arith.constant 0 : index
    %54 = vector.load %arg6[%c0_45, %c0_46] : memref<16x16xf32, #tpu.memory_space<vmem>>, vector<16x16xf32>
    %c0_47 = arith.constant 0 : index
    %c0_48 = arith.constant 0 : index
    %55 = vector.load %arg7[%c0_47, %c0_48] : memref<16x6xf32, #tpu.memory_space<vmem>>, vector<16x6xf32>
    %c0_49 = arith.constant 0 : index
    %c0_50 = arith.constant 0 : index
    %56 = vector.load %arg8[%c0_49, %c0_50] : memref<16x1xf32, #tpu.memory_space<vmem>>, vector<16x1xf32>
    %cst_51 = arith.constant dense<0xFF800000> : vector<16xf32>
    %57 = vector.multi_reduction <maximumf>, %53, %cst_51 [1] : vector<16x128xf32> to vector<16xf32>
    %58 = vector.shape_cast %57 : vector<16xf32> to vector<16x1xf32>
    %59 = vector.broadcast %58 : vector<16x1xf32> to vector<16x128xf32>
    %60 = arith.addf %53, %59 : vector<16x128xf32>
    %cst_52 = arith.constant dense<0.000000e+00> : vector<16x128xf32>
    %61 = tpu.matmul %54, %60, %cst_52 {dimension_numbers = #tpu.dot_dimension_numbers<[1], [0], [0], [1], [0, 0, 1, 1], [], []>} : vector<16x16xf32>, vector<16x128xf32>, vector<16x128xf32> -> vector<16x128xf32>
    %cst_53 = arith.constant dense<0.000000e+00> : vector<16x128xf32>
    %62 = tpu.matmul %55, %39, %cst_53 {dimension_numbers = #tpu.dot_dimension_numbers<[1], [0], [0], [1], [0, 0, 1, 1], [], []>} : vector<16x6xf32>, vector<6x128xf32>, vector<16x128xf32> -> vector<16x128xf32>
    %63 = arith.addf %61, %62 : vector<16x128xf32>
    %64 = vector.broadcast %56 : vector<16x1xf32> to vector<16x128xf32>
    %65 = arith.addf %63, %64 : vector<16x128xf32>
    %cst_54 = arith.constant 0.000000e+00 : f32
    %66 = vector.broadcast %cst_54 : f32 to vector<16x128xf32>
    %67 = arith.maximumf %65, %66 : vector<16x128xf32>
    %c0_55 = arith.constant 0 : index
    %c0_56 = arith.constant 0 : index
    %68 = vector.load %arg9[%c0_55, %c0_56] : memref<1x16xf32, #tpu.memory_space<vmem>>, vector<1x16xf32>
    %c0_57 = arith.constant 0 : index
    %c0_58 = arith.constant 0 : index
    %69 = vector.load %arg10[%c0_57, %c0_58] : memref<1x1xf32, #tpu.memory_space<vmem>>, vector<1x1xf32>
    %cst_59 = arith.constant dense<0.000000e+00> : vector<1x128xf32>
    %70 = tpu.matmul %68, %67, %cst_59 {dimension_numbers = #tpu.dot_dimension_numbers<[1], [0], [0], [1], [0, 0, 1, 1], [], []>} : vector<1x16xf32>, vector<16x128xf32>, vector<1x128xf32> -> vector<1x128xf32>
    %71 = vector.broadcast %69 : vector<1x1xf32> to vector<1x128xf32>
    %72 = arith.addf %70, %71 : vector<1x128xf32>
    %c1_60 = arith.constant 1 : index
    %c0_61 = arith.constant 0 : index
    %c0_62 = arith.constant 0 : index
    %73 = vector.load %arg11[%c1_60, %c0_61, %c0_62] : memref<2x1x128xf32, #tpu.memory_space<vmem>>, vector<1x1x128xf32>
    %74 = vector.shape_cast %73 : vector<1x1x128xf32> to vector<1x128xf32>
    %75 = vector.shape_cast %72 : vector<1x128xf32> to vector<1x1x128xf32>
    tpu.vector_store %arg11[%c1_60, %c0_61, %c0_62], %75 {strides = array<i32>} : memref<2x1x128xf32, #tpu.memory_space<vmem>>, vector<1x1x128xf32>,
    return
  }
  func.func @transform_0(%arg0: i32) -> (i32, i32, i32) {
    %c0_i32 = arith.constant 0 : i32
    %c0_i32_0 = arith.constant 0 : i32
    %c0_i32_1 = arith.constant 0 : i32
    return %arg0, %c0_i32, %c0_i32_0 : i32, i32, i32
  }
  func.func @transform_1(%arg0: i32) -> (i32, i32) {
    %c0_i32 = arith.constant 0 : i32
    %c0_i32_0 = arith.constant 0 : i32
    %c0_i32_1 = arith.constant 0 : i32
    return %c0_i32, %c0_i32_0 : i32, i32
  }
  func.func @transform_2(%arg0: i32) -> (i32, i32) {
    %c0_i32 = arith.constant 0 : i32
    %c0_i32_0 = arith.constant 0 : i32
    %c0_i32_1 = arith.constant 0 : i32
    return %c0_i32, %c0_i32_0 : i32, i32
  }
  func.func @transform_3(%arg0: i32) -> (i32, i32) {
    %c0_i32 = arith.constant 0 : i32
    %c0_i32_0 = arith.constant 0 : i32
    %c0_i32_1 = arith.constant 0 : i32
    return %c0_i32, %c0_i32_0 : i32, i32
  }
  func.func @transform_4(%arg0: i32) -> (i32, i32) {
    %c0_i32 = arith.constant 0 : i32
    %c0_i32_0 = arith.constant 0 : i32
    %c0_i32_1 = arith.constant 0 : i32
    return %c0_i32, %c0_i32_0 : i32, i32
  }
  func.func @transform_5(%arg0: i32) -> (i32, i32) {
    %c0_i32 = arith.constant 0 : i32
    %c0_i32_0 = arith.constant 0 : i32
    %c0_i32_1 = arith.constant 0 : i32
    return %c0_i32, %c0_i32_0 : i32, i32
  }
  func.func @transform_6(%arg0: i32) -> (i32, i32) {
    %c0_i32 = arith.constant 0 : i32
    %c0_i32_0 = arith.constant 0 : i32
    %c0_i32_1 = arith.constant 0 : i32
    return %c0_i32, %c0_i32_0 : i32, i32
  }
  func.func @transform_7(%arg0: i32) -> (i32, i32) {
    %c0_i32 = arith.constant 0 : i32
    %c0_i32_0 = arith.constant 0 : i32
    %c0_i32_1 = arith.constant 0 : i32
    return %c0_i32, %c0_i32_0 : i32, i32
  }
  func.func @transform_8(%arg0: i32) -> (i32, i32) {
    %c0_i32 = arith.constant 0 : i32
    %c0_i32_0 = arith.constant 0 : i32
    %c0_i32_1 = arith.constant 0 : i32
    return %c0_i32, %c0_i32_0 : i32, i32
  }
  func.func @transform_9(%arg0: i32) -> (i32, i32) {
    %c0_i32 = arith.constant 0 : i32
    %c0_i32_0 = arith.constant 0 : i32
    %c0_i32_1 = arith.constant 0 : i32
    return %c0_i32, %c0_i32_0 : i32, i32
  }
  func.func @transform_10(%arg0: i32) -> (i32, i32, i32) {
    %c0_i32 = arith.constant 0 : i32
    %c0_i32_0 = arith.constant 0 : i32
    %c0_i32_1 = arith.constant 0 : i32
    return %arg0, %c0_i32, %c0_i32_0 : i32, i32, i32
  }
}

</mosaic_0001>

<llo_original>
// kernel: tpu_custom_call.1
$region0: #{tpu_custom_call.1}
  #allocation0 [shape = 'u32[]', space=smem, size = 0x4, offset = 0x4, fixed_abs, tag = 'smem constant byte address 0x4 - core index']
  #allocation1 [shape = 'u32[144,128]{1,0:T(1,128)}', space=vmem, size = 0x12000, scoped, tag = 'internal scratch']
  #allocation2 [shape = 'f32[1,1]{1,0:T(1,128)S(1)}', space=vmem, size = 0x200, scoped, tag = 'scoped memory for tpu_custom_call.1']
  %s0 = inlined_call_operand.vmem [shape: f32[2,6,128], index: 0, kind: input, shape index: {}]
  %s1 = inlined_call_operand.vmem [shape: f32[16,6], index: 1, kind: input, shape index: {}]
  %s2 = inlined_call_operand.vmem [shape: f32[16,1], index: 2, kind: input, shape index: {}]
  %s3 = inlined_call_operand.vmem [shape: f32[16,16], index: 3, kind: input, shape index: {}]
  %s4 = inlined_call_operand.vmem [shape: f32[16,1], index: 4, kind: input, shape index: {}]
  %s5 = inlined_call_operand.vmem [shape: f32[16,16], index: 5, kind: input, shape index: {}]
  %s6 = inlined_call_operand.vmem [shape: f32[16,6], index: 6, kind: input, shape index: {}]
  %s7 = inlined_call_operand.vmem [shape: f32[16,1], index: 7, kind: input, shape index: {}]
  %s8 = inlined_call_operand.vmem [shape: f32[1,16], index: 8, kind: input, shape index: {}]
  %s9 = inlined_call_operand.<no memory space> [shape: f32[1,1], index: 9, kind: input, shape index: {}]
  %s10 = inlined_call_operand.hbm [shape: f32[2,1,128], index: 10, kind: output, shape index: {}]
  %s11 = sld [smem:[#allocation0]]
  $region50: #{tpu_custom_call.1} parent=0
    _
  %s13 = ssub.s32 1, %s11
  %s14 = scalar_select 0, %s13, %s11
  %v15 = vstv %s9
  %16 = vst [vmem:[#allocation2] sm:$0x1] %v15
  $region1: #{tpu_custom_call.1} parent=0
    #allocation3 [shape = 'u8[1024]{0}', space=vmem, size = 0x400, scoped, tag = 'output window, operand 0, single buffered']
    #allocation4 [shape = 's32[1]{0}', space=sflag, size = 0x4, scoped, tag = 'scoped memory for tpu_custom_call.1']
    %17 = vsyncpa [#allocation4], 0
    // Predicated region
    $region2: #{tpu_custom_call.1} parent=1 // pred_check
      _
    $region3: #{tpu_custom_call.1} parent=1 // pred_check_branch
      %19 = sbr.rel (0) target = $region5
    $region4: #{tpu_custom_call.1} parent=1 // pred_region
      _
    $region5: #{tpu_custom_call.1} parent=1 // pred_fallthru
      _
    // Predicated region
    $region6: #{tpu_custom_call.1} parent=1 // pred_check
      _
    $region7: #{tpu_custom_call.1} parent=1 // pred_check_branch
      %21 = sbr.rel (0) target = $region9
    $region8: #{tpu_custom_call.1} parent=1 // pred_region
      _
    $region9: #{tpu_custom_call.1} parent=1 // pred_fallthru
      _
    // Predicated region
    $region10: #{tpu_custom_call.1} parent=1 // pred_check
      _
    $region11: #{tpu_custom_call.1} parent=1 // pred_check_branch
      %23 = sbr.rel (0) target = $region13
    $region12: #{tpu_custom_call.1} parent=1 // pred_region
      _
    $region13: #{tpu_custom_call.1} parent=1 // pred_fallthru
      _
    // Predicated region
    $region14: #{tpu_custom_call.1} parent=1 // pred_check
      _
    $region15: #{tpu_custom_call.1} parent=1 // pred_check_branch
      %25 = sbr.rel (0) target = $region17
    $region16: #{tpu_custom_call.1} parent=1 // pred_region
      _
    $region17: #{tpu_custom_call.1} parent=1 // pred_fallthru
      _
    // Predicated region
    $region18: #{tpu_custom_call.1} parent=1 // pred_check
      _
    $region19: #{tpu_custom_call.1} parent=1 // pred_check_branch
      %27 = sbr.rel (0) target = $region21
    $region20: #{tpu_custom_call.1} parent=1 // pred_region
      _
    $region21: #{tpu_custom_call.1} parent=1 // pred_fallthru
      _
    // Predicated region
    $region22: #{tpu_custom_call.1} parent=1 // pred_check
      _
    $region23: #{tpu_custom_call.1} parent=1 // pred_check_branch
      %29 = sbr.rel (0) target = $region25
    $region24: #{tpu_custom_call.1} parent=1 // pred_region
      _
    $region25: #{tpu_custom_call.1} parent=1 // pred_fallthru
      _
    // Predicated region
    $region26: #{tpu_custom_call.1} parent=1 // pred_check
      _
    $region27: #{tpu_custom_call.1} parent=1 // pred_check_branch
      %31 = sbr.rel (0) target = $region29
    $region28: #{tpu_custom_call.1} parent=1 // pred_region
      _
    $region29: #{tpu_custom_call.1} parent=1 // pred_fallthru
      _
    // Predicated region
    $region30: #{tpu_custom_call.1} parent=1 // pred_check
      _
    $region31: #{tpu_custom_call.1} parent=1 // pred_check_branch
      %33 = sbr.rel (0) target = $region33
    $region32: #{tpu_custom_call.1} parent=1 // pred_region
      _
    $region33: #{tpu_custom_call.1} parent=1 // pred_fallthru
      _
    // Predicated region
    $region34: #{tpu_custom_call.1} parent=1 // pred_check
      _
    $region35: #{tpu_custom_call.1} parent=1 // pred_check_branch
      %35 = sbr.rel (0) target = $region37
    $region36: #{tpu_custom_call.1} parent=1 // pred_region
      _
    $region37: #{tpu_custom_call.1} parent=1 // pred_fallthru
      _
    // Predicated region
    $region38: #{tpu_custom_call.1} parent=1 // pred_check
      _
    $region39: #{tpu_custom_call.1} parent=1 // pred_check_branch
      %37 = sbr.rel (0) target = $region41
    $region40: #{tpu_custom_call.1} parent=1 // pred_region
      _
    $region41: #{tpu_custom_call.1} parent=1 // pred_fallthru
      _
    %v38 = vld [vmem:[%s0] sm:$0x3f]
    %v39 = vld [vmem:[%s1] sm:$0xff]
    %v40 = vld [vmem:[%s1 + $0x8] sm:$0xff]
    %v41 = vld [vmem:[%s2] sm:$0xff]
    %v42 = vld [vmem:[%s2 + $0x8] sm:$0xff]
    %44 = vset.pattern.permute.xlu0 0
    %45 = vperm.xlu0 %44, %v41
    %v46 = vpop.permute.xlu0 %45
    %49 = vset.pattern.permute.xlu0 0
    %50 = vperm.xlu0 %49, %v42
    %v51 = vpop.permute.xlu0 %50
    %vm53 = vcmask 48128
    %v55 = vsel %vm53, %v39, 0
    %v58 = vsel %vm53, %v40, 0
    %vm60 = vcmask 1045504
    %v62 = vsel %vm60, %v38, 0
    %64 = vmatprep.subr.mxu0 0.0
    %65 = vmatpush1.msra.mxu0 %v62
    %66 = vmatprep.subr.mxu0 0.0
    %67 = vmatpush1.msra.mxu0 0.0
    %68 = vmatprep.subr.mxu0 0.0
    %69 = vmatpush1.msra.mxu0 0.0
    %70 = vmatprep.subr.mxu0 0.0
    %71 = vmatpush1.msra.mxu0 0.0
    %72 = vmatprep.subr.mxu0 0.0
    %73 = vmatpush1.msra.mxu0 0.0
    %74 = vmatprep.subr.mxu0 0.0
    %75 = vmatpush1.msra.mxu0 0.0
    %76 = vmatprep.subr.mxu0 0.0
    %77 = vmatpush1.msra.mxu0 0.0
    %78 = vmatprep.subr.mxu0 0.0
    %79 = vmatpush1.msra.mxu0 0.0
    %80 = vmatprep.subr.mxu0 0.0
    %81 = vmatpush1.msra.mxu0 0.0
    %82 = vmatprep.subr.mxu0 0.0
    %83 = vmatpush1.msra.mxu0 0.0
    %84 = vmatprep.subr.mxu0 0.0
    %85 = vmatpush1.msra.mxu0 0.0
    %86 = vmatprep.subr.mxu0 0.0
    %87 = vmatpush1.msra.mxu0 0.0
    %88 = vmatprep.subr.mxu0 0.0
    %89 = vmatpush1.msra.mxu0 0.0
    %90 = vmatprep.subr.mxu0 0.0
    %91 = vmatpush1.msra.mxu0 0.0
    %92 = vmatprep.subr.mxu0 0.0
    %93 = vmatpush1.msra.mxu0 0.0
    %94 = vmatprep.subr.mxu0 0.0
    %95 = vmatpush1.msra.mxu0 0.0
    %96 = vmatprep.subr.mxu0 0.0
    %97 = vmatpush1.msra.mxu0 0.0
    %98 = vmatprep.subr.mxu0 0.0
    %99 = vmatpush1.msra.mxu0 0.0
    %100 = vmatprep.subr.mxu0 0.0
    %101 = vmatpush1.msra.mxu0 0.0
    %102 = vmatprep.subr.mxu0 0.0
    %103 = vmatpush1.msra.mxu0 0.0
    %104 = vmatprep.subr.mxu0 0.0
    %105 = vmatpush1.msra.mxu0 0.0
    %106 = vmatprep.subr.mxu0 0.0
    %107 = vmatpush1.msra.mxu0 0.0
    %108 = vmatprep.subr.mxu0 0.0
    %109 = vmatpush1.msra.mxu0 0.0
    %110 = vmatprep.subr.mxu0 0.0
    %111 = vmatpush1.msra.mxu0 0.0
    %112 = vmatprep.subr.mxu0 0.0
    %113 = vmatpush1.msra.mxu0 0.0
    %114 = vmatprep.subr.mxu0 0.0
    %115 = vmatpush1.msra.mxu0 0.0
    %116 = vmatprep.subr.mxu0 0.0
    %117 = vmatpush1.msra.mxu0 0.0
    %118 = vmatprep.subr.mxu0 0.0
    %119 = vmatpush1.msra.mxu0 0.0
    %120 = vmatprep.subr.mxu0 0.0
    %121 = vmatpush1.msra.mxu0 0.0
    %122 = vmatprep.subr.mxu0 0.0
    %123 = vmatpush1.msra.mxu0 0.0
    %124 = vmatprep.subr.mxu0 0.0
    %125 = vmatpush1.msra.mxu0 0.0
    %126 = vmatprep.subr.mxu0 0.0
    %127 = vmatpush1.msra.mxu0 0.0
    %128 = vmatprep.mubr.f32.mxu0 0.0
    %129 = vmatmul.mubr.f32.gmra.mrb[0].mxu0 %v55
    %v130 = vpop.f32.mrb[0].mxu0
    %v131 = vadd.f32 %v46, %v130
    %v132 = vpop.f32.mrb[0].mxu0
    %133 = vmatprep.mubr.f32.mxu0 0.0
    %134 = vmatmul.mubr.f32.gmra.mrb[0].mxu0 %v58
    %v135 = vpop.f32.mrb[0].mxu0
    %v136 = vadd.f32 %v51, %v135
    %v137 = vpop.f32.mrb[0].mxu0
    %138 = vdwg.mxu0
    %v139 = vmax.f32 %v131, 0.0
    %v140 = vmax.f32 %v136, 0.0
    %v141 = vld [vmem:[%s3] sm:$0xff]
    %v142 = vld [vmem:[%s3 + $0x8] sm:$0xff]
    %v143 = vld [vmem:[%s4] sm:$0xff]
    %v144 = vld [vmem:[%s4 + $0x8] sm:$0xff]
    %146 = vset.pattern.permute.xlu0 0
    %147 = vperm.xlu0 %146, %v143
    %v148 = vpop.permute.xlu0 %147
    %151 = vset.pattern.permute.xlu0 0
    %152 = vperm.xlu0 %151, %v144
    %v153 = vpop.permute.xlu0 %152
    %vm155 = vcmask 130048
    %v157 = vsel %vm155, %v141, 0
    %v160 = vsel %vm155, %v142, 0
    %162 = vmatprep.subr.mxu0 0.0
    %163 = vmatpush1.msra.mxu0 %v139
    %164 = vmatprep.subr.mxu0 0.0
    %165 = vmatpush1.msra.mxu0 %v140
    %166 = vmatprep.subr.mxu0 0.0
    %167 = vmatpush1.msra.mxu0 0.0
    %168 = vmatprep.subr.mxu0 0.0
    %169 = vmatpush1.msra.mxu0 0.0
    %170 = vmatprep.subr.mxu0 0.0
    %171 = vmatpush1.msra.mxu0 0.0
    %172 = vmatprep.subr.mxu0 0.0
    %173 = vmatpush1.msra.mxu0 0.0
    %174 = vmatprep.subr.mxu0 0.0
    %175 = vmatpush1.msra.mxu0 0.0
    %176 = vmatprep.subr.mxu0 0.0
    %177 = vmatpush1.msra.mxu0 0.0
    %178 = vmatprep.subr.mxu0 0.0
    %179 = vmatpush1.msra.mxu0 0.0
    %180 = vmatprep.subr.mxu0 0.0
    %181 = vmatpush1.msra.mxu0 0.0
    %182 = vmatprep.subr.mxu0 0.0
    %183 = vmatpush1.msra.mxu0 0.0
    %184 = vmatprep.subr.mxu0 0.0
    %185 = vmatpush1.msra.mxu0 0.0
    %186 = vmatprep.subr.mxu0 0.0
    %187 = vmatpush1.msra.mxu0 0.0
    %188 = vmatprep.subr.mxu0 0.0
    %189 = vmatpush1.msra.mxu0 0.0
    %190 = vmatprep.subr.mxu0 0.0
    %191 = vmatpush1.msra.mxu0 0.0
    %192 = vmatprep.subr.mxu0 0.0
    %193 = vmatpush1.msra.mxu0 0.0
    %194 = vmatprep.subr.mxu0 0.0
    %195 = vmatpush1.msra.mxu0 0.0
    %196 = vmatprep.subr.mxu0 0.0
    %197 = vmatpush1.msra.mxu0 0.0
    %198 = vmatprep.subr.mxu0 0.0
    %199 = vmatpush1.msra.mxu0 0.0
    %200 = vmatprep.subr.mxu0 0.0
    %201 = vmatpush1.msra.mxu0 0.0
    %202 = vmatprep.subr.mxu0 0.0
    %203 = vmatpush1.msra.mxu0 0.0
    %204 = vmatprep.subr.mxu0 0.0
    %205 = vmatpush1.msra.mxu0 0.0
    %206 = vmatprep.subr.mxu0 0.0
    %207 = vmatpush1.msra.mxu0 0.0
    %208 = vmatprep.subr.mxu0 0.0
    %209 = vmatpush1.msra.mxu0 0.0
    %210 = vmatprep.subr.mxu0 0.0
    %211 = vmatpush1.msra.mxu0 0.0
    %212 = vmatprep.subr.mxu0 0.0
    %213 = vmatpush1.msra.mxu0 0.0
    %214 = vmatprep.subr.mxu0 0.0
    %215 = vmatpush1.msra.mxu0 0.0
    %216 = vmatprep.subr.mxu0 0.0
    %217 = vmatpush1.msra.mxu0 0.0
    %218 = vmatprep.subr.mxu0 0.0
    %219 = vmatpush1.msra.mxu0 0.0
    %220 = vmatprep.subr.mxu0 0.0
    %221 = vmatpush1.msra.mxu0 0.0
    %222 = vmatprep.subr.mxu0 0.0
    %223 = vmatpush1.msra.mxu0 0.0
    %224 = vmatprep.subr.mxu0 0.0
    %225 = vmatpush1.msra.mxu0 0.0
    %226 = vmatprep.mubr.f32.mxu0 0.0
    %227 = vmatmul.mubr.f32.gmra.mrb[0].mxu0 %v157
    %v228 = vpop.f32.mrb[0].mxu0
    %v229 = vadd.f32 %v148, %v228
    %v230 = vpop.f32.mrb[0].mxu0
    %231 = vmatprep.mubr.f32.mxu0 0.0
    %232 = vmatmul.mubr.f32.gmra.mrb[0].mxu0 %v160
    %v233 = vpop.f32.mrb[0].mxu0
    %v234 = vadd.f32 %v153, %v233
    %v235 = vpop.f32.mrb[0].mxu0
    %236 = vdwg.mxu0
    %v237 = vmax.f32 %v229, 0.0
    %v238 = vmax.f32 %v234, 0.0
    %v239 = vld [vmem:[%s5] sm:$0xff]
    %v240 = vld [vmem:[%s5 + $0x8] sm:$0xff]
    %v241 = vld [vmem:[%s6] sm:$0xff]
    %v242 = vld [vmem:[%s6 + $0x8] sm:$0xff]
    %v243 = vld [vmem:[%s7] sm:$0xff]
    %v244 = vld [vmem:[%s7 + $0x8] sm:$0xff]
    %245 = vmax.xlane.f32.xlu0 %v237
    %v246 = vpop.xlane.xlu0 %245
    %247 = vmax.xlane.f32.xlu0 %v238
    %v248 = vpop.xlane.xlu0 %247
    %v249 = vadd.f32 %v237, %v246
    %v250 = vadd.f32 %v238, %v248
    %v252 = vsel %vm53, %v241, 0
    %v255 = vsel %vm53, %v242, 0
    %257 = vmatprep.subr.mxu0 0.0
    %258 = vmatpush1.msra.mxu0 %v62
    %259 = vmatprep.subr.mxu0 0.0
    %260 = vmatpush1.msra.mxu0 0.0
    %261 = vmatprep.subr.mxu0 0.0
    %262 = vmatpush1.msra.mxu0 0.0
    %263 = vmatprep.subr.mxu0 0.0
    %264 = vmatpush1.msra.mxu0 0.0
    %265 = vmatprep.subr.mxu0 0.0
    %266 = vmatpush1.msra.mxu0 0.0
    %267 = vmatprep.subr.mxu0 0.0
    %268 = vmatpush1.msra.mxu0 0.0
    %269 = vmatprep.subr.mxu0 0.0
    %270 = vmatpush1.msra.mxu0 0.0
    %271 = vmatprep.subr.mxu0 0.0
    %272 = vmatpush1.msra.mxu0 0.0
    %273 = vmatprep.subr.mxu0 0.0
    %274 = vmatpush1.msra.mxu0 0.0
    %275 = vmatprep.subr.mxu0 0.0
    %276 = vmatpush1.msra.mxu0 0.0
    %277 = vmatprep.subr.mxu0 0.0
    %278 = vmatpush1.msra.mxu0 0.0
    %279 = vmatprep.subr.mxu0 0.0
    %280 = vmatpush1.msra.mxu0 0.0
    %281 = vmatprep.subr.mxu0 0.0
    %282 = vmatpush1.msra.mxu0 0.0
    %283 = vmatprep.subr.mxu0 0.0
    %284 = vmatpush1.msra.mxu0 0.0
    %285 = vmatprep.subr.mxu0 0.0
    %286 = vmatpush1.msra.mxu0 0.0
    %287 = vmatprep.subr.mxu0 0.0
    %288 = vmatpush1.msra.mxu0 0.0
    %289 = vmatprep.subr.mxu0 0.0
    %290 = vmatpush1.msra.mxu0 0.0
    %291 = vmatprep.subr.mxu0 0.0
    %292 = vmatpush1.msra.mxu0 0.0
    %293 = vmatprep.subr.mxu0 0.0
    %294 = vmatpush1.msra.mxu0 0.0
    %295 = vmatprep.subr.mxu0 0.0
    %296 = vmatpush1.msra.mxu0 0.0
    %297 = vmatprep.subr.mxu0 0.0
    %298 = vmatpush1.msra.mxu0 0.0
    %299 = vmatprep.subr.mxu0 0.0
    %300 = vmatpush1.msra.mxu0 0.0
    %301 = vmatprep.subr.mxu0 0.0
    %302 = vmatpush1.msra.mxu0 0.0
    %303 = vmatprep.subr.mxu0 0.0
    %304 = vmatpush1.msra.mxu0 0.0
    %305 = vmatprep.subr.mxu0 0.0
    %306 = vmatpush1.msra.mxu0 0.0
    %307 = vmatprep.subr.mxu0 0.0
    %308 = vmatpush1.msra.mxu0 0.0
    %309 = vmatprep.subr.mxu0 0.0
    %310 = vmatpush1.msra.mxu0 0.0
    %311 = vmatprep.subr.mxu0 0.0
    %312 = vmatpush1.msra.mxu0 0.0
    %313 = vmatprep.subr.mxu0 0.0
    %314 = vmatpush1.msra.mxu0 0.0
    %315 = vmatprep.subr.mxu0 0.0
    %316 = vmatpush1.msra.mxu0 0.0
    %317 = vmatprep.subr.mxu0 0.0
    %318 = vmatpush1.msra.mxu0 0.0
    %319 = vmatprep.subr.mxu0 0.0
    %320 = vmatpush1.msra.mxu0 0.0
    %321 = vmatprep.mubr.f32.mxu0 0.0
    %322 = vmatmul.mubr.f32.gmra.mrb[0].mxu0 %v252
    %v323 = vpop.f32.mrb[0].mxu0
    %v324 = vadd.f32 0.0, %v323
    %v325 = vpop.f32.mrb[0].mxu0
    %326 = vmatprep.mubr.f32.mxu0 0.0
    %327 = vmatmul.mubr.f32.gmra.mrb[0].mxu0 %v255
    %v328 = vpop.f32.mrb[0].mxu0
    %v329 = vadd.f32 0.0, %v328
    %v330 = vpop.f32.mrb[0].mxu0
    %331 = vdwg.mxu0
    %v333 = vsel %vm155, %v239, 0
    %v336 = vsel %vm155, %v240, 0
    %338 = vmatprep.subr.mxu0 0.0
    %339 = vmatpush1.msra.mxu0 %v249
    %340 = vmatprep.subr.mxu0 0.0
    %341 = vmatpush1.msra.mxu0 %v250
    %342 = vmatprep.subr.mxu0 0.0
    %343 = vmatpush1.msra.mxu0 0.0
    %344 = vmatprep.subr.mxu0 0.0
    %345 = vmatpush1.msra.mxu0 0.0
    %346 = vmatprep.subr.mxu0 0.0
    %347 = vmatpush1.msra.mxu0 0.0
    %348 = vmatprep.subr.mxu0 0.0
    %349 = vmatpush1.msra.mxu0 0.0
    %350 = vmatprep.subr.mxu0 0.0
    %351 = vmatpush1.msra.mxu0 0.0
    %352 = vmatprep.subr.mxu0 0.0
    %353 = vmatpush1.msra.mxu0 0.0
    %354 = vmatprep.subr.mxu0 0.0
    %355 = vmatpush1.msra.mxu0 0.0
    %356 = vmatprep.subr.mxu0 0.0
    %357 = vmatpush1.msra.mxu0 0.0
    %358 = vmatprep.subr.mxu0 0.0
    %359 = vmatpush1.msra.mxu0 0.0
    %360 = vmatprep.subr.mxu0 0.0
    %361 = vmatpush1.msra.mxu0 0.0
    %362 = vmatprep.subr.mxu0 0.0
    %363 = vmatpush1.msra.mxu0 0.0
    %364 = vmatprep.subr.mxu0 0.0
    %365 = vmatpush1.msra.mxu0 0.0
    %366 = vmatprep.subr.mxu0 0.0
    %367 = vmatpush1.msra.mxu0 0.0
    %368 = vmatprep.subr.mxu0 0.0
    %369 = vmatpush1.msra.mxu0 0.0
    %370 = vmatprep.subr.mxu0 0.0
    %371 = vmatpush1.msra.mxu0 0.0
    %372 = vmatprep.subr.mxu0 0.0
    %373 = vmatpush1.msra.mxu0 0.0
    %374 = vmatprep.subr.mxu0 0.0
    %375 = vmatpush1.msra.mxu0 0.0
    %376 = vmatprep.subr.mxu0 0.0
    %377 = vmatpush1.msra.mxu0 0.0
    %378 = vmatprep.subr.mxu0 0.0
    %379 = vmatpush1.msra.mxu0 0.0
    %380 = vmatprep.subr.mxu0 0.0
    %381 = vmatpush1.msra.mxu0 0.0
    %382 = vmatprep.subr.mxu0 0.0
    %383 = vmatpush1.msra.mxu0 0.0
    %384 = vmatprep.subr.mxu0 0.0
    %385 = vmatpush1.msra.mxu0 0.0
    %386 = vmatprep.subr.mxu0 0.0
    %387 = vmatpush1.msra.mxu0 0.0
    %388 = vmatprep.subr.mxu0 0.0
    %389 = vmatpush1.msra.mxu0 0.0
    %390 = vmatprep.subr.mxu0 0.0
    %391 = vmatpush1.msra.mxu0 0.0
    %392 = vmatprep.subr.mxu0 0.0
    %393 = vmatpush1.msra.mxu0 0.0
    %394 = vmatprep.subr.mxu0 0.0
    %395 = vmatpush1.msra.mxu0 0.0
    %396 = vmatprep.subr.mxu0 0.0
    %397 = vmatpush1.msra.mxu0 0.0
    %398 = vmatprep.subr.mxu0 0.0
    %399 = vmatpush1.msra.mxu0 0.0
    %400 = vmatprep.subr.mxu0 0.0
    %401 = vmatpush1.msra.mxu0 0.0
    %402 = vmatprep.mubr.f32.mxu0 0.0
    %403 = vmatmul.mubr.f32.gmra.mrb[0].mxu0 %v333
    %v404 = vpop.f32.mrb[0].mxu0
    %v405 = vadd.f32 %v324, %v404
    %v406 = vpop.f32.mrb[0].mxu0
    %407 = vmatprep.mubr.f32.mxu0 0.0
    %408 = vmatmul.mubr.f32.gmra.mrb[0].mxu0 %v336
    %v409 = vpop.f32.mrb[0].mxu0
    %v410 = vadd.f32 %v329, %v409
    %v411 = vpop.f32.mrb[0].mxu0
    %412 = vdwg.mxu0
    %414 = vset.pattern.permute.xlu0 0
    %415 = vperm.xlu0 %414, %v243
    %v416 = vpop.permute.xlu0 %415
    %419 = vset.pattern.permute.xlu0 0
    %420 = vperm.xlu0 %419, %v244
    %v421 = vpop.permute.xlu0 %420
    %v423 = vadd.f32 %v405, %v416
    %v424 = vadd.f32 %v410, %v421
    %v425 = vmax.f32 %v423, 0.0
    %v426 = vmax.f32 %v424, 0.0
    %v427 = vld [vmem:[%s8] sm:$0x1]
    %v428 = vld [vmem:[#allocation2] sm:$0x1]
    %430 = vset.pattern.permute.xlu0 0
    %431 = vperm.xlu0 %430, %v428
    %v432 = vpop.permute.xlu0 %431
    %v434 = vlaneseq
    %v435 = vshrl.u32 %v434, 7
    %v436 = vsub.s32 0, %v435
    %v437 = vrot.slane %v432, %v436
    %v439 = vsel %vm155, %v427, 0
    %441 = vmatprep.subr.mxu0 0.0
    %442 = vmatpush1.msra.mxu0 %v425
    %443 = vmatprep.subr.mxu0 0.0
    %444 = vmatpush1.msra.mxu0 %v426
    %445 = vmatprep.subr.mxu0 0.0
    %446 = vmatpush1.msra.mxu0 0.0
    %447 = vmatprep.subr.mxu0 0.0
    %448 = vmatpush1.msra.mxu0 0.0
    %449 = vmatprep.subr.mxu0 0.0
    %450 = vmatpush1.msra.mxu0 0.0
    %451 = vmatprep.subr.mxu0 0.0
    %452 = vmatpush1.msra.mxu0 0.0
    %453 = vmatprep.subr.mxu0 0.0
    %454 = vmatpush1.msra.mxu0 0.0
    %455 = vmatprep.subr.mxu0 0.0
    %456 = vmatpush1.msra.mxu0 0.0
    %457 = vmatprep.subr.mxu0 0.0
    %458 = vmatpush1.msra.mxu0 0.0
    %459 = vmatprep.subr.mxu0 0.0
    %460 = vmatpush1.msra.mxu0 0.0
    %461 = vmatprep.subr.mxu0 0.0
    %462 = vmatpush1.msra.mxu0 0.0
    %463 = vmatprep.subr.mxu0 0.0
    %464 = vmatpush1.msra.mxu0 0.0
    %465 = vmatprep.subr.mxu0 0.0
    %466 = vmatpush1.msra.mxu0 0.0
    %467 = vmatprep.subr.mxu0 0.0
    %468 = vmatpush1.msra.mxu0 0.0
    %469 = vmatprep.subr.mxu0 0.0
    %470 = vmatpush1.msra.mxu0 0.0
    %471 = vmatprep.subr.mxu0 0.0
    %472 = vmatpush1.msra.mxu0 0.0
    %473 = vmatprep.subr.mxu0 0.0
    %474 = vmatpush1.msra.mxu0 0.0
    %475 = vmatprep.subr.mxu0 0.0
    %476 = vmatpush1.msra.mxu0 0.0
    %477 = vmatprep.subr.mxu0 0.0
    %478 = vmatpush1.msra.mxu0 0.0
    %479 = vmatprep.subr.mxu0 0.0
    %480 = vmatpush1.msra.mxu0 0.0
    %481 = vmatprep.subr.mxu0 0.0
    %482 = vmatpush1.msra.mxu0 0.0
    %483 = vmatprep.subr.mxu0 0.0
    %484 = vmatpush1.msra.mxu0 0.0
    %485 = vmatprep.subr.mxu0 0.0
    %486 = vmatpush1.msra.mxu0 0.0
    %487 = vmatprep.subr.mxu0 0.0
    %488 = vmatpush1.msra.mxu0 0.0
    %489 = vmatprep.subr.mxu0 0.0
    %490 = vmatpush1.msra.mxu0 0.0
    %491 = vmatprep.subr.mxu0 0.0
    %492 = vmatpush1.msra.mxu0 0.0
    %493 = vmatprep.subr.mxu0 0.0
    %494 = vmatpush1.msra.mxu0 0.0
    %495 = vmatprep.subr.mxu0 0.0
    %496 = vmatpush1.msra.mxu0 0.0
    %497 = vmatprep.subr.mxu0 0.0
    %498 = vmatpush1.msra.mxu0 0.0
    %499 = vmatprep.subr.mxu0 0.0
    %500 = vmatpush1.msra.mxu0 0.0
    %501 = vmatprep.subr.mxu0 0.0
    %502 = vmatpush1.msra.mxu0 0.0
    %503 = vmatprep.subr.mxu0 0.0
    %504 = vmatpush1.msra.mxu0 0.0
    %505 = vmatprep.mubr.f32.mxu0 0.0
    %506 = vmatmul.mubr.f32.gmra.mrb[0].mxu0 %v439
    %v507 = vpop.f32.mrb[0].mxu0
    %v508 = vadd.f32 %v437, %v507
    %v509 = vpop.f32.mrb[0].mxu0
    %510 = vdwg.mxu0
    %511 = vst [vmem:[#allocation3] sm:$0x1] %v508
    %s512 = scalar_lea.vmem %s0, 8
    %v513 = vld [vmem:[%s512] sm:$0x3f]
    %v514 = vld [vmem:[%s1] sm:$0xff]
    %v515 = vld [vmem:[%s1 + $0x8] sm:$0xff]
    %v516 = vld [vmem:[%s2] sm:$0xff]
    %v517 = vld [vmem:[%s2 + $0x8] sm:$0xff]
    %519 = vset.pattern.permute.xlu0 0
    %520 = vperm.xlu0 %519, %v516
    %v521 = vpop.permute.xlu0 %520
    %524 = vset.pattern.permute.xlu0 0
    %525 = vperm.xlu0 %524, %v517
    %v526 = vpop.permute.xlu0 %525
    %v529 = vsel %vm53, %v514, 0
    %v532 = vsel %vm53, %v515, 0
    %v535 = vsel %vm60, %v513, 0
    %537 = vmatprep.subr.mxu0 0.0
    %538 = vmatpush1.msra.mxu0 %v535
    %539 = vmatprep.subr.mxu0 0.0
    %540 = vmatpush1.msra.mxu0 0.0
    %541 = vmatprep.subr.mxu0 0.0
    %542 = vmatpush1.msra.mxu0 0.0
    %543 = vmatprep.subr.mxu0 0.0
    %544 = vmatpush1.msra.mxu0 0.0
    %545 = vmatprep.subr.mxu0 0.0
    %546 = vmatpush1.msra.mxu0 0.0
    %547 = vmatprep.subr.mxu0 0.0
    %548 = vmatpush1.msra.mxu0 0.0
    %549 = vmatprep.subr.mxu0 0.0
    %550 = vmatpush1.msra.mxu0 0.0
    %551 = vmatprep.subr.mxu0 0.0
    %552 = vmatpush1.msra.mxu0 0.0
    %553 = vmatprep.subr.mxu0 0.0
    %554 = vmatpush1.msra.mxu0 0.0
    %555 = vmatprep.subr.mxu0 0.0
    %556 = vmatpush1.msra.mxu0 0.0
    %557 = vmatprep.subr.mxu0 0.0
    %558 = vmatpush1.msra.mxu0 0.0
    %559 = vmatprep.subr.mxu0 0.0
    %560 = vmatpush1.msra.mxu0 0.0
    %561 = vmatprep.subr.mxu0 0.0
    %562 = vmatpush1.msra.mxu0 0.0
    %563 = vmatprep.subr.mxu0 0.0
    %564 = vmatpush1.msra.mxu0 0.0
    %565 = vmatprep.subr.mxu0 0.0
    %566 = vmatpush1.msra.mxu0 0.0
    %567 = vmatprep.subr.mxu0 0.0
    %568 = vmatpush1.msra.mxu0 0.0
    %569 = vmatprep.subr.mxu0 0.0
    %570 = vmatpush1.msra.mxu0 0.0
    %571 = vmatprep.subr.mxu0 0.0
    %572 = vmatpush1.msra.mxu0 0.0
    %573 = vmatprep.subr.mxu0 0.0
    %574 = vmatpush1.msra.mxu0 0.0
    %575 = vmatprep.subr.mxu0 0.0
    %576 = vmatpush1.msra.mxu0 0.0
    %577 = vmatprep.subr.mxu0 0.0
    %578 = vmatpush1.msra.mxu0 0.0
    %579 = vmatprep.subr.mxu0 0.0
    %580 = vmatpush1.msra.mxu0 0.0
    %581 = vmatprep.subr.mxu0 0.0
    %582 = vmatpush1.msra.mxu0 0.0
    %583 = vmatprep.subr.mxu0 0.0
    %584 = vmatpush1.msra.mxu0 0.0
    %585 = vmatprep.subr.mxu0 0.0
    %586 = vmatpush1.msra.mxu0 0.0
    %587 = vmatprep.subr.mxu0 0.0
    %588 = vmatpush1.msra.mxu0 0.0
    %589 = vmatprep.subr.mxu0 0.0
    %590 = vmatpush1.msra.mxu0 0.0
    %591 = vmatprep.subr.mxu0 0.0
    %592 = vmatpush1.msra.mxu0 0.0
    %593 = vmatprep.subr.mxu0 0.0
    %594 = vmatpush1.msra.mxu0 0.0
    %595 = vmatprep.subr.mxu0 0.0
    %596 = vmatpush1.msra.mxu0 0.0
    %597 = vmatprep.subr.mxu0 0.0
    %598 = vmatpush1.msra.mxu0 0.0
    %599 = vmatprep.subr.mxu0 0.0
    %600 = vmatpush1.msra.mxu0 0.0
    %601 = vmatprep.mubr.f32.mxu0 0.0
    %602 = vmatmul.mubr.f32.gmra.mrb[0].mxu0 %v529
    %v603 = vpop.f32.mrb[0].mxu0
    %v604 = vadd.f32 %v521, %v603
    %v605 = vpop.f32.mrb[0].mxu0
    %606 = vmatprep.mubr.f32.mxu0 0.0
    %607 = vmatmul.mubr.f32.gmra.mrb[0].mxu0 %v532
    %v608 = vpop.f32.mrb[0].mxu0
    %v609 = vadd.f32 %v526, %v608
    %v610 = vpop.f32.mrb[0].mxu0
    %611 = vdwg.mxu0
    %v612 = vmax.f32 %v604, 0.0
    %v613 = vmax.f32 %v609, 0.0
    %v614 = vld [vmem:[%s3] sm:$0xff]
    %v615 = vld [vmem:[%s3 + $0x8] sm:$0xff]
    %v616 = vld [vmem:[%s4] sm:$0xff]
    %v617 = vld [vmem:[%s4 + $0x8] sm:$0xff]
    %619 = vset.pattern.permute.xlu0 0
    %620 = vperm.xlu0 %619, %v616
    %v621 = vpop.permute.xlu0 %620
    %624 = vset.pattern.permute.xlu0 0
    %625 = vperm.xlu0 %624, %v617
    %v626 = vpop.permute.xlu0 %625
    %v629 = vsel %vm155, %v614, 0
    %v632 = vsel %vm155, %v615, 0
    %634 = vmatprep.subr.mxu0 0.0
    %635 = vmatpush1.msra.mxu0 %v612
    %636 = vmatprep.subr.mxu0 0.0
    %637 = vmatpush1.msra.mxu0 %v613
    %638 = vmatprep.subr.mxu0 0.0
    %639 = vmatpush1.msra.mxu0 0.0
    %640 = vmatprep.subr.mxu0 0.0
    %641 = vmatpush1.msra.mxu0 0.0
    %642 = vmatprep.subr.mxu0 0.0
    %643 = vmatpush1.msra.mxu0 0.0
    %644 = vmatprep.subr.mxu0 0.0
    %645 = vmatpush1.msra.mxu0 0.0
    %646 = vmatprep.subr.mxu0 0.0
    %647 = vmatpush1.msra.mxu0 0.0
    %648 = vmatprep.subr.mxu0 0.0
    %649 = vmatpush1.msra.mxu0 0.0
    %650 = vmatprep.subr.mxu0 0.0
    %651 = vmatpush1.msra.mxu0 0.0
    %652 = vmatprep.subr.mxu0 0.0
    %653 = vmatpush1.msra.mxu0 0.0
    %654 = vmatprep.subr.mxu0 0.0
    %655 = vmatpush1.msra.mxu0 0.0
    %656 = vmatprep.subr.mxu0 0.0
    %657 = vmatpush1.msra.mxu0 0.0
    %658 = vmatprep.subr.mxu0 0.0
    %659 = vmatpush1.msra.mxu0 0.0
    %660 = vmatprep.subr.mxu0 0.0
    %661 = vmatpush1.msra.mxu0 0.0
    %662 = vmatprep.subr.mxu0 0.0
    %663 = vmatpush1.msra.mxu0 0.0
    %664 = vmatprep.subr.mxu0 0.0
    %665 = vmatpush1.msra.mxu0 0.0
    %666 = vmatprep.subr.mxu0 0.0
    %667 = vmatpush1.msra.mxu0 0.0
    %668 = vmatprep.subr.mxu0 0.0
    %669 = vmatpush1.msra.mxu0 0.0
    %670 = vmatprep.subr.mxu0 0.0
    %671 = vmatpush1.msra.mxu0 0.0
    %672 = vmatprep.subr.mxu0 0.0
    %673 = vmatpush1.msra.mxu0 0.0
    %674 = vmatprep.subr.mxu0 0.0
    %675 = vmatpush1.msra.mxu0 0.0
    %676 = vmatprep.subr.mxu0 0.0
    %677 = vmatpush1.msra.mxu0 0.0
    %678 = vmatprep.subr.mxu0 0.0
    %679 = vmatpush1.msra.mxu0 0.0
    %680 = vmatprep.subr.mxu0 0.0
    %681 = vmatpush1.msra.mxu0 0.0
    %682 = vmatprep.subr.mxu0 0.0
    %683 = vmatpush1.msra.mxu0 0.0
    %684 = vmatprep.subr.mxu0 0.0
    %685 = vmatpush1.msra.mxu0 0.0
    %686 = vmatprep.subr.mxu0 0.0
    %687 = vmatpush1.msra.mxu0 0.0
    %688 = vmatprep.subr.mxu0 0.0
    %689 = vmatpush1.msra.mxu0 0.0
    %690 = vmatprep.subr.mxu0 0.0
    %691 = vmatpush1.msra.mxu0 0.0
    %692 = vmatprep.subr.mxu0 0.0
    %693 = vmatpush1.msra.mxu0 0.0
    %694 = vmatprep.subr.mxu0 0.0
    %695 = vmatpush1.msra.mxu0 0.0
    %696 = vmatprep.subr.mxu0 0.0
    %697 = vmatpush1.msra.mxu0 0.0
    %698 = vmatprep.mubr.f32.mxu0 0.0
    %699 = vmatmul.mubr.f32.gmra.mrb[0].mxu0 %v629
    %v700 = vpop.f32.mrb[0].mxu0
    %v701 = vadd.f32 %v621, %v700
    %v702 = vpop.f32.mrb[0].mxu0
    %703 = vmatprep.mubr.f32.mxu0 0.0
    %704 = vmatmul.mubr.f32.gmra.mrb[0].mxu0 %v632
    %v705 = vpop.f32.mrb[0].mxu0
    %v706 = vadd.f32 %v626, %v705
    %v707 = vpop.f32.mrb[0].mxu0
    %708 = vdwg.mxu0
    %v709 = vmax.f32 %v701, 0.0
    %v710 = vmax.f32 %v706, 0.0
    %v711 = vld [vmem:[%s5] sm:$0xff]
    %v712 = vld [vmem:[%s5 + $0x8] sm:$0xff]
    %v713 = vld [vmem:[%s6] sm:$0xff]
    %v714 = vld [vmem:[%s6 + $0x8] sm:$0xff]
    %v715 = vld [vmem:[%s7] sm:$0xff]
    %v716 = vld [vmem:[%s7 + $0x8] sm:$0xff]
    %717 = vmax.xlane.f32.xlu0 %v709
    %v718 = vpop.xlane.xlu0 %717
    %719 = vmax.xlane.f32.xlu0 %v710
    %v720 = vpop.xlane.xlu0 %719
    %v721 = vadd.f32 %v709, %v718
    %v722 = vadd.f32 %v710, %v720
    %v724 = vsel %vm53, %v713, 0
    %v727 = vsel %vm53, %v714, 0
    %729 = vmatprep.subr.mxu0 0.0
    %730 = vmatpush1.msra.mxu0 %v535
    %731 = vmatprep.subr.mxu0 0.0
    %732 = vmatpush1.msra.mxu0 0.0
    %733 = vmatprep.subr.mxu0 0.0
    %734 = vmatpush1.msra.mxu0 0.0
    %735 = vmatprep.subr.mxu0 0.0
    %736 = vmatpush1.msra.mxu0 0.0
    %737 = vmatprep.subr.mxu0 0.0
    %738 = vmatpush1.msra.mxu0 0.0
    %739 = vmatprep.subr.mxu0 0.0
    %740 = vmatpush1.msra.mxu0 0.0
    %741 = vmatprep.subr.mxu0 0.0
    %742 = vmatpush1.msra.mxu0 0.0
    %743 = vmatprep.subr.mxu0 0.0
    %744 = vmatpush1.msra.mxu0 0.0
    %745 = vmatprep.subr.mxu0 0.0
    %746 = vmatpush1.msra.mxu0 0.0
    %747 = vmatprep.subr.mxu0 0.0
    %748 = vmatpush1.msra.mxu0 0.0
    %749 = vmatprep.subr.mxu0 0.0
    %750 = vmatpush1.msra.mxu0 0.0
    %751 = vmatprep.subr.mxu0 0.0
    %752 = vmatpush1.msra.mxu0 0.0
    %753 = vmatprep.subr.mxu0 0.0
    %754 = vmatpush1.msra.mxu0 0.0
    %755 = vmatprep.subr.mxu0 0.0
    %756 = vmatpush1.msra.mxu0 0.0
    %757 = vmatprep.subr.mxu0 0.0
    %758 = vmatpush1.msra.mxu0 0.0
    %759 = vmatprep.subr.mxu0 0.0
    %760 = vmatpush1.msra.mxu0 0.0
    %761 = vmatprep.subr.mxu0 0.0
    %762 = vmatpush1.msra.mxu0 0.0
    %763 = vmatprep.subr.mxu0 0.0
    %764 = vmatpush1.msra.mxu0 0.0
    %765 = vmatprep.subr.mxu0 0.0
    %766 = vmatpush1.msra.mxu0 0.0
    %767 = vmatprep.subr.mxu0 0.0
    %768 = vmatpush1.msra.mxu0 0.0
    %769 = vmatprep.subr.mxu0 0.0
    %770 = vmatpush1.msra.mxu0 0.0
    %771 = vmatprep.subr.mxu0 0.0
    %772 = vmatpush1.msra.mxu0 0.0
    %773 = vmatprep.subr.mxu0 0.0
    %774 = vmatpush1.msra.mxu0 0.0
    %775 = vmatprep.subr.mxu0 0.0
    %776 = vmatpush1.msra.mxu0 0.0
    %777 = vmatprep.subr.mxu0 0.0
    %778 = vmatpush1.msra.mxu0 0.0
    %779 = vmatprep.subr.mxu0 0.0
    %780 = vmatpush1.msra.mxu0 0.0
    %781 = vmatprep.subr.mxu0 0.0
    %782 = vmatpush1.msra.mxu0 0.0
    %783 = vmatprep.subr.mxu0 0.0
    %784 = vmatpush1.msra.mxu0 0.0
    %785 = vmatprep.subr.mxu0 0.0
    %786 = vmatpush1.msra.mxu0 0.0
    %787 = vmatprep.subr.mxu0 0.0
    %788 = vmatpush1.msra.mxu0 0.0
    %789 = vmatprep.subr.mxu0 0.0
    %790 = vmatpush1.msra.mxu0 0.0
    %791 = vmatprep.subr.mxu0 0.0
    %792 = vmatpush1.msra.mxu0 0.0
    %793 = vmatprep.mubr.f32.mxu0 0.0
    %794 = vmatmul.mubr.f32.gmra.mrb[0].mxu0 %v724
    %v795 = vpop.f32.mrb[0].mxu0
    %v796 = vadd.f32 0.0, %v795
    %v797 = vpop.f32.mrb[0].mxu0
    %798 = vmatprep.mubr.f32.mxu0 0.0
    %799 = vmatmul.mubr.f32.gmra.mrb[0].mxu0 %v727
    %v800 = vpop.f32.mrb[0].mxu0
    %v801 = vadd.f32 0.0, %v800
    %v802 = vpop.f32.mrb[0].mxu0
    %803 = vdwg.mxu0
    %v805 = vsel %vm155, %v711, 0
    %v808 = vsel %vm155, %v712, 0
    %810 = vmatprep.subr.mxu0 0.0
    %811 = vmatpush1.msra.mxu0 %v721
    %812 = vmatprep.subr.mxu0 0.0
    %813 = vmatpush1.msra.mxu0 %v722
    %814 = vmatprep.subr.mxu0 0.0
    %815 = vmatpush1.msra.mxu0 0.0
    %816 = vmatprep.subr.mxu0 0.0
    %817 = vmatpush1.msra.mxu0 0.0
    %818 = vmatprep.subr.mxu0 0.0
    %819 = vmatpush1.msra.mxu0 0.0
    %820 = vmatprep.subr.mxu0 0.0
    %821 = vmatpush1.msra.mxu0 0.0
    %822 = vmatprep.subr.mxu0 0.0
    %823 = vmatpush1.msra.mxu0 0.0
    %824 = vmatprep.subr.mxu0 0.0
    %825 = vmatpush1.msra.mxu0 0.0
    %826 = vmatprep.subr.mxu0 0.0
    %827 = vmatpush1.msra.mxu0 0.0
    %828 = vmatprep.subr.mxu0 0.0
    %829 = vmatpush1.msra.mxu0 0.0
    %830 = vmatprep.subr.mxu0 0.0
    %831 = vmatpush1.msra.mxu0 0.0
    %832 = vmatprep.subr.mxu0 0.0
    %833 = vmatpush1.msra.mxu0 0.0
    %834 = vmatprep.subr.mxu0 0.0
    %835 = vmatpush1.msra.mxu0 0.0
    %836 = vmatprep.subr.mxu0 0.0
    %837 = vmatpush1.msra.mxu0 0.0
    %838 = vmatprep.subr.mxu0 0.0
    %839 = vmatpush1.msra.mxu0 0.0
    %840 = vmatprep.subr.mxu0 0.0
    %841 = vmatpush1.msra.mxu0 0.0
    %842 = vmatprep.subr.mxu0 0.0
    %843 = vmatpush1.msra.mxu0 0.0
    %844 = vmatprep.subr.mxu0 0.0
    %845 = vmatpush1.msra.mxu0 0.0
    %846 = vmatprep.subr.mxu0 0.0
    %847 = vmatpush1.msra.mxu0 0.0
    %848 = vmatprep.subr.mxu0 0.0
    %849 = vmatpush1.msra.mxu0 0.0
    %850 = vmatprep.subr.mxu0 0.0
    %851 = vmatpush1.msra.mxu0 0.0
    %852 = vmatprep.subr.mxu0 0.0
    %853 = vmatpush1.msra.mxu0 0.0
    %854 = vmatprep.subr.mxu0 0.0
    %855 = vmatpush1.msra.mxu0 0.0
    %856 = vmatprep.subr.mxu0 0.0
    %857 = vmatpush1.msra.mxu0 0.0
    %858 = vmatprep.subr.mxu0 0.0
    %859 = vmatpush1.msra.mxu0 0.0
    %860 = vmatprep.subr.mxu0 0.0
    %861 = vmatpush1.msra.mxu0 0.0
    %862 = vmatprep.subr.mxu0 0.0
    %863 = vmatpush1.msra.mxu0 0.0
    %864 = vmatprep.subr.mxu0 0.0
    %865 = vmatpush1.msra.mxu0 0.0
    %866 = vmatprep.subr.mxu0 0.0
    %867 = vmatpush1.msra.mxu0 0.0
    %868 = vmatprep.subr.mxu0 0.0
    %869 = vmatpush1.msra.mxu0 0.0
    %870 = vmatprep.subr.mxu0 0.0
    %871 = vmatpush1.msra.mxu0 0.0
    %872 = vmatprep.subr.mxu0 0.0
    %873 = vmatpush1.msra.mxu0 0.0
    %874 = vmatprep.mubr.f32.mxu0 0.0
    %875 = vmatmul.mubr.f32.gmra.mrb[0].mxu0 %v805
    %v876 = vpop.f32.mrb[0].mxu0
    %v877 = vadd.f32 %v796, %v876
    %v878 = vpop.f32.mrb[0].mxu0
    %879 = vmatprep.mubr.f32.mxu0 0.0
    %880 = vmatmul.mubr.f32.gmra.mrb[0].mxu0 %v808
    %v881 = vpop.f32.mrb[0].mxu0
    %v882 = vadd.f32 %v801, %v881
    %v883 = vpop.f32.mrb[0].mxu0
    %884 = vdwg.mxu0
    %886 = vset.pattern.permute.xlu0 0
    %887 = vperm.xlu0 %886, %v715
    %v888 = vpop.permute.xlu0 %887
    %891 = vset.pattern.permute.xlu0 0
    %892 = vperm.xlu0 %891, %v716
    %v893 = vpop.permute.xlu0 %892
    %v895 = vadd.f32 %v877, %v888
    %v896 = vadd.f32 %v882, %v893
    %v897 = vmax.f32 %v895, 0.0
    %v898 = vmax.f32 %v896, 0.0
    %v899 = vld [vmem:[%s8] sm:$0x1]
    %v900 = vld [vmem:[#allocation2] sm:$0x1]
    %902 = vset.pattern.permute.xlu0 0
    %903 = vperm.xlu0 %902, %v900
    %v904 = vpop.permute.xlu0 %903
    %v906 = vlaneseq
    %v907 = vshrl.u32 %v906, 7
    %v908 = vsub.s32 0, %v907
    %v909 = vrot.slane %v904, %v908
    %v911 = vsel %vm155, %v899, 0
    %913 = vmatprep.subr.mxu0 0.0
    %914 = vmatpush1.msra.mxu0 %v897
    %915 = vmatprep.subr.mxu0 0.0
    %916 = vmatpush1.msra.mxu0 %v898
    %917 = vmatprep.subr.mxu0 0.0
    %918 = vmatpush1.msra.mxu0 0.0
    %919 = vmatprep.subr.mxu0 0.0
    %920 = vmatpush1.msra.mxu0 0.0
    %921 = vmatprep.subr.mxu0 0.0
    %922 = vmatpush1.msra.mxu0 0.0
    %923 = vmatprep.subr.mxu0 0.0
    %924 = vmatpush1.msra.mxu0 0.0
    %925 = vmatprep.subr.mxu0 0.0
    %926 = vmatpush1.msra.mxu0 0.0
    %927 = vmatprep.subr.mxu0 0.0
    %928 = vmatpush1.msra.mxu0 0.0
    %929 = vmatprep.subr.mxu0 0.0
    %930 = vmatpush1.msra.mxu0 0.0
    %931 = vmatprep.subr.mxu0 0.0
    %932 = vmatpush1.msra.mxu0 0.0
    %933 = vmatprep.subr.mxu0 0.0
    %934 = vmatpush1.msra.mxu0 0.0
    %935 = vmatprep.subr.mxu0 0.0
    %936 = vmatpush1.msra.mxu0 0.0
    %937 = vmatprep.subr.mxu0 0.0
    %938 = vmatpush1.msra.mxu0 0.0
    %939 = vmatprep.subr.mxu0 0.0
    %940 = vmatpush1.msra.mxu0 0.0
    %941 = vmatprep.subr.mxu0 0.0
    %942 = vmatpush1.msra.mxu0 0.0
    %943 = vmatprep.subr.mxu0 0.0
    %944 = vmatpush1.msra.mxu0 0.0
    %945 = vmatprep.subr.mxu0 0.0
    %946 = vmatpush1.msra.mxu0 0.0
    %947 = vmatprep.subr.mxu0 0.0
    %948 = vmatpush1.msra.mxu0 0.0
    %949 = vmatprep.subr.mxu0 0.0
    %950 = vmatpush1.msra.mxu0 0.0
    %951 = vmatprep.subr.mxu0 0.0
    %952 = vmatpush1.msra.mxu0 0.0
    %953 = vmatprep.subr.mxu0 0.0
    %954 = vmatpush1.msra.mxu0 0.0
    %955 = vmatprep.subr.mxu0 0.0
    %956 = vmatpush1.msra.mxu0 0.0
    %957 = vmatprep.subr.mxu0 0.0
    %958 = vmatpush1.msra.mxu0 0.0
    %959 = vmatprep.subr.mxu0 0.0
    %960 = vmatpush1.msra.mxu0 0.0
    %961 = vmatprep.subr.mxu0 0.0
    %962 = vmatpush1.msra.mxu0 0.0
    %963 = vmatprep.subr.mxu0 0.0
    %964 = vmatpush1.msra.mxu0 0.0
    %965 = vmatprep.subr.mxu0 0.0
    %966 = vmatpush1.msra.mxu0 0.0
    %967 = vmatprep.subr.mxu0 0.0
    %968 = vmatpush1.msra.mxu0 0.0
    %969 = vmatprep.subr.mxu0 0.0
    %970 = vmatpush1.msra.mxu0 0.0
    %971 = vmatprep.subr.mxu0 0.0
    %972 = vmatpush1.msra.mxu0 0.0
    %973 = vmatprep.subr.mxu0 0.0
    %974 = vmatpush1.msra.mxu0 0.0
    %975 = vmatprep.subr.mxu0 0.0
    %976 = vmatpush1.msra.mxu0 0.0
    %977 = vmatprep.mubr.f32.mxu0 0.0
    %978 = vmatmul.mubr.f32.gmra.mrb[0].mxu0 %v911
    %v979 = vpop.f32.mrb[0].mxu0
    %v980 = vadd.f32 %v909, %v979
    %v981 = vpop.f32.mrb[0].mxu0
    %982 = vdwg.mxu0
    %s983 = scalar_lea.vmem [#allocation3], 1
    %984 = vst [vmem:[%s983] sm:$0x1] %v980
    // Predicated region
    $region42: #{tpu_custom_call.1} parent=1 // pred_check
      _
    $region43: #{tpu_custom_call.1} parent=1 // pred_check_branch
      %986 = sbr.rel (0) target = $region45
    $region44: #{tpu_custom_call.1} parent=1 // pred_region
      %s988 = ssub.s32 32, 32
      %989 = vsyncadd [#allocation4], %s988
      %s990 = sshll.u32 [#allocation3], 4
      %s991 = int_to_ptr.vmem [resolvable:$true] %s990
      %996 = dma.vmem_to_hbm [thread:$0]  %s991, 32, %s10, [#allocation4], 16, 16, 1
    $region45: #{tpu_custom_call.1} parent=1 // pred_fallthru
      _
    // Predicated region
    $region46: #{tpu_custom_call.1} parent=1 // pred_check
      _
    $region47: #{tpu_custom_call.1} parent=1 // pred_check_branch
      %998 = sbr.rel (0) target = $region49
    $region48: #{tpu_custom_call.1} parent=1 // pred_region
      %999 = dma.done [#allocation4], 32
    $region49: #{tpu_custom_call.1} parent=1 // pred_fallthru
      _
    %1000 = vsyncpa [#allocation4], 1

</llo_original>
